<compile_context>
chip_gen: v5e
topology: v5e:2x2
jax: 0.10.0
libtpu: 0.0.40
codegen_flags: <defaults>
</compile_context>

<pallas_src>
import math

import jax
import jax.numpy as jnp
from jax.experimental import pallas as pl
from jax.experimental.pallas import tpu as pltpu

J = 23
JP = 24  # 23 real joints + 1 homogeneous "offset" joint -> multiple of 8 sublanes
PARENTS = [-1, 0, 1, 1, 3, 4, 5, 4, 7, 4, 9, 1, 11, 12, 13, 12, 15, 12, 17, 0, 19, 0, 21]


# ----------------------------- plain-JAX glue --------------------------------
def build_pose(params):
    """(23, 3) axis-angle pose tensor, exactly as the PyTorch forward builds it."""
    pose = jnp.zeros((J, 3), jnp.float32)
    pose = pose.at[0].set(math.pi / 2 * jnp.tanh(params['joint_0'][0]))
    pose = pose.at[1].set(math.pi / 4 * jnp.tanh(params['joint_1'][0]))
    pose = pose.at[2].set(math.pi / 9 * jnp.tanh(params['joint_2'][0]))
    j3 = jnp.tanh(params['joint_3'][0])
    pose = pose.at[3].set(math.pi / 3 * j3)
    pose = pose.at[11].set(
        jnp.array([math.pi / 3, -math.pi / 3, -math.pi / 3], jnp.float32) * j3)
    pose = pose.at[4].set(math.pi / 3 * jnp.tanh(params['joint_4'][0]))
    pose = pose.at[12].set(math.pi / 3 * jnp.tanh(params['joint_12'][0]))
    pose = pose.at[13].set(math.pi / 3 * jnp.tanh(params['joint_13'][0]))
    pose = pose.at[5].set(math.pi / 3 * jnp.tanh(params['joint_5'][0]))
    return pose


def rodrigues(r):
    """Axis-angle (J, 3) -> rotation matrices (J, 3, 3)."""
    theta = jnp.linalg.norm(r, axis=-1, keepdims=True)            # (J, 1)
    axis = r / (theta + 1e-8)
    x, y, z = axis[:, 0], axis[:, 1], axis[:, 2]
    zero = jnp.zeros_like(x)
    K = jnp.stack([zero, -z, y,
                   z, zero, -x,
                   -y, x, zero], axis=-1).reshape(-1, 3, 3)        # (J, 3, 3)
    th = theta[:, :, None]
    I = jnp.eye(3, dtype=r.dtype)[None]
    return I + jnp.sin(th) * K + (1.0 - jnp.cos(th)) * (K @ K)


def kinematic_transforms(rotmats, rest_joints):
    """Compose the kinematic chain (standard SMPL-style LBS).

    rotmats:     (J, 3, 3) per-joint local rotations
    rest_joints: (J, 3)    rest-pose joint locations
    returns:     A (J, 16) relative transforms (rest pose removed, row-major 4x4),
                 posed_joints (J, 3)
    """
    def make_T(R, t):
        T = jnp.zeros((4, 4), dtype=R.dtype)
        T = T.at[:3, :3].set(R)
        T = T.at[:3, 3].set(t)
        return T.at[3, 3].set(1.0)

    G = [None] * J
    G[0] = make_T(rotmats[0], rest_joints[0])
    for k in range(1, J):
        p = PARENTS[k]
        G[k] = G[p] @ make_T(rotmats[k], rest_joints[k] - rest_joints[p])
    G = jnp.stack(G, axis=0)                                       # (J, 4, 4)
    posed_joints = G[:, :3, 3]
    offs = jnp.einsum('jab,jb->ja', G[:, :3, :3], rest_joints)     # (J, 3)
    A = G.at[:, :3, 3].add(-offs)
    return A.reshape(J, 16), posed_joints


# ------------------------------ Pallas kernel ---------------------------------
def lbs_skin_kernel(va_ref, w_ref, At_ref, out_ref):
    # va_ref:  (6, TV)   rows 0..2 template vertices, rows 3..5 local_adjust (lane-dense)
    # w_ref:   (JP, TV)  skinning weights + homogeneous row of ones
    # At_ref:  (12, JP)  folded per-joint affines (only the 12 used 4x4 rows), transposed
    # out_ref: (3, TV)   posed vertices, coordinate-major
    va = va_ref[...]
    v = va[0:3, :] + 0.1 * jnp.tanh(va[3:6, :])                            # (3, TV)
    # per-vertex blended (already scaled+offset) transform rows: (12, JP) @ (JP, TV)
    T = jnp.dot(At_ref[...], w_ref[...], preferred_element_type=jnp.float32)
    x, y, z = v[0:1, :], v[1:2, :], v[2:3, :]
    out_ref[0:1, :] = T[0:1, :] * x + T[1:2, :] * y + T[2:3, :] * z + T[3:4, :]
    out_ref[1:2, :] = T[4:5, :] * x + T[5:6, :] * y + T[6:7, :] * z + T[7:8, :]
    out_ref[2:3, :] = T[8:9, :] * x + T[9:10, :] * y + T[10:11, :] * z + T[11:12, :]


def _round_up(x, m):
    return (x + m - 1) // m * m


def lbs_skin_pallas(vtadj_T, w_T, At, *, tile_v=4096):
    """vtadj_T: (6, V)   w_T: (JP, V)   At: (12, JP)   -> (3, V) posed vertices.

    No explicit padding / output slicing: Pallas handles the ragged last block
    (the kernel has no cross-lane ops, so garbage pad lanes are harmless and
    out-of-range output lanes are masked on store)."""
    V = vtadj_T.shape[1]
    jp = w_T.shape[0]
    # Big tiles amortize per-step overhead; cap so the grid has >= 2 steps so the
    # "parallel" axis can shard across both v7x TensorCores (neutral on v5e/v6e).
    tile_v = max(128, min(tile_v, _round_up(pl.cdiv(V, 2), 128)))
    grid = (pl.cdiv(V, tile_v),)
    return pl.pallas_call(
        lbs_skin_kernel,
        out_shape=jax.ShapeDtypeStruct((3, V), jnp.float32),
        grid=grid,
        in_specs=[
            pl.BlockSpec((6, tile_v), lambda i: (0, i)),
            pl.BlockSpec((jp, tile_v), lambda i: (0, i)),
            pl.BlockSpec((12, jp), lambda i: (0, 0)),
        ],
        out_specs=pl.BlockSpec((3, tile_v), lambda i: (0, i)),
        compiler_params=pltpu.CompilerParams(dimension_semantics=("parallel",)),
    )(vtadj_T, w_T, At)


# --------------------- one-time kernel-friendly layouts -----------------------
def make_kernel_layouts(params, buffers):
    """Done ONCE at init (not in the per-call hot path).  In a training setup the
    learned `local_adjust` would be stored directly in the (3, V) layout."""
    V = buffers['vertices'].shape[1]
    vt_T = buffers['vertices'][0].T.astype(jnp.float32)              # (3, V)
    adj_T = params['local_adjust'][0].T.astype(jnp.float32)          # (3, V)
    vtadj_T = jnp.concatenate([vt_T, adj_T], axis=0)                 # (6, V) single input slab
    w_T = jnp.concatenate(
        [buffers['skining'][0].T.astype(jnp.float32),
         jnp.ones((JP - J, V), jnp.float32)], axis=0)                # (24, V) incl. ones row
    return dict(vtadj_T=vtadj_T, w_T=w_T)


# ------------------------------- forward pass ---------------------------------
def model_forward(params, buffers, layouts, batch_size, estimated_location):
    # --- build pose tensor (23, 3) exactly as the PyTorch forward does ---
    pose = build_pose(params)

    # --- kinematic chain (small, sequential -> plain JAX glue) ---
    R = rodrigues(pose)
    A_flat, _posed_joints = kinematic_transforms(R, buffers['joints'][0])  # (23, 16)

    # estimated_location.unsqueeze(1)[0] -> first batch element, shape (3,)
    loc = estimated_location[0].astype(jnp.float32)
    disp = params['displacement'][0, 0]
    scale = params['scale'][0]
    offset = loc + 0.1 * jnp.tanh(disp)                                    # (3,)

    # Fold the final affine (0.0035*scale*x + offset) into the per-joint transforms.
    # Only the first 12 rows of each 4x4 are ever read by the epilogue.
    A12 = (0.0035 * scale) * A_flat[:, :12]                                # (23, 12)
    extra = (jnp.zeros((12,), jnp.float32)
             .at[3].set(offset[0]).at[7].set(offset[1]).at[11].set(offset[2]))
    At = jnp.concatenate([A12, extra[None, :]], axis=0).T                  # (12, 24)

    # --- hot path: skinning + vertex transform (+ folded affine) in Pallas ---
    verts_T = lbs_skin_pallas(layouts['vtadj_T'], layouts['w_T'], At)      # (3, V)

    # downstream sr.Mesh consumers expect (B, V, 3) -> single transpose of the output
    verts = verts_T.T                                                      # (V, 3)
    mesh_vertices = jnp.broadcast_to(verts[None], (batch_size,) + verts.shape)
    mesh_faces = jnp.broadcast_to(
        buffers['faces'], (batch_size,) + buffers['faces'].shape[1:])

    # Original also computes posed joints and a laplacian loss; neither is returned.
    # TODO(synk): sr.Mesh texture handling and sr.LaplacianLoss are not translated.
    return ((mesh_vertices, mesh_faces), pose, params['scale'],
            params['displacement'], params['local_adjust'])


# ---------------------------- pure-JAX reference -------------------------------
def _reference_vertices(params, buffers, estimated_location):
    pose = build_pose(params)
    R = rodrigues(pose)
    A_flat, _ = kinematic_transforms(R, buffers['joints'][0])
    A = A_flat.reshape(J, 4, 4)
    v = buffers['vertices'][0] + 0.1 * jnp.tanh(params['local_adjust'][0])   # (V, 3)
    T = jnp.einsum('vj,jab->vab', buffers['skining'][0], A)                  # (V, 4, 4)
    vh = jnp.concatenate([v, jnp.ones((v.shape[0], 1), jnp.float32)], axis=-1)
    posed = jnp.einsum('vab,vb->va', T, vh)[:, :3]
    loc = estimated_location[0]
    disp = params['displacement'][0, 0]
    return (0.0035 * params['scale'][0] * posed
            + loc[None, :] + 0.1 * jnp.tanh(disp)[None, :])


# ----------------------------------- main --------------------------------------
if __name__ == "__main__":
    V = 200          # number of template vertices (small, not 128-aligned -> ragged block)
    F = 64           # number of faces
    B = 2            # batch size

    key = jax.random.PRNGKey(0)
    keys = jax.random.split(key, 12)

    # synthetic template data (replaces the .obj / .pkl loads)
    template_vertices = jax.random.normal(keys[0], (1, V, 3), jnp.float32)
    rest_joints = jax.random.normal(keys[1], (1, J, 3), jnp.float32)
    skin_logits = jax.random.normal(keys[2], (1, V, J), jnp.float32)
    skining = jax.nn.softmax(skin_logits, axis=-1)                 # rows sum to 1
    faces = jax.random.randint(keys[3], (1, F, 3), 0, V, jnp.int32)

    buffers = dict(vertices=template_vertices, joints=rest_joints,
                   skining=skining, faces=faces)

    # parameters (module inits these to zeros/ones; use small random values so the
    # kinematic / skinning math is exercised nontrivially — synthetic kernel).
    def small(k, shape):
        return 0.3 * jax.random.normal(k, shape, jnp.float32)

    params = dict(
        displacement=small(keys[4], (1, 1, 3)),
        scale=jnp.ones((1,), jnp.float32),
        local_adjust=small(keys[5], (1, V, 3)),
        joint_0=small(keys[6], (1, 3)),
        joint_1=small(keys[7], (1, 3)),
        joint_2=small(keys[8], (1, 3)),
        joint_3=small(keys[9], (1, 3)),
        joint_4=small(keys[10], (1, 3)),
        joint_5=jnp.zeros((1, 3), jnp.float32),
        joint_12=small(keys[11], (1, 3)),
        joint_13=jnp.zeros((1, 3), jnp.float32),
    )

    estimated_location = jax.random.normal(jax.random.PRNGKey(1), (B, 3), jnp.float32)

    # one-time layout prep (coordinate-major / joint-major) — NOT in the hot path
    layouts = jax.tree.map(jax.block_until_ready, make_kernel_layouts(params, buffers))

    fwd = jax.jit(model_forward, static_argnums=(3,))
    (mesh_v, mesh_f), pose, scale, disp, ladj = fwd(
        params, buffers, layouts, B, estimated_location)
    jax.block_until_ready(mesh_v)

    assert mesh_v.shape == (B, V, 3)
    assert mesh_f.shape == (B, F, 3)
    assert pose.shape == (J, 3)

    ref = _reference_vertices(params, buffers, estimated_location)
    err = float(jnp.max(jnp.abs(mesh_v[0] - ref)))
    assert err < 1e-4, f"mismatch vs reference: {err}"

    print("KERNEL_OK")
</pallas_src>

<mosaic_0001>
module attributes {stable_mosaic.version = 11 : i64} {
  func.func @lbs_skin_kernel(%arg0: i32, %arg1: memref<6x128xf32, #tpu.memory_space<vmem>>, %arg2: memref<24x128xf32, #tpu.memory_space<vmem>>, %arg3: memref<12x24xf32, #tpu.memory_space<vmem>>, %arg4: memref<3x128xf32, #tpu.memory_space<vmem>>) attributes {dimension_semantics = [#tpu.dimension_semantics<parallel>], iteration_bounds = array<i64: 2>, scalar_prefetch = 0 : i64, scratch_operands = 0 : i64, tpu.core_type = #tpu.core_type<tc>, window_params = [{transform_indices = @transform_0, window_bounds = array<i64: 6, 128>}, {transform_indices = @transform_1, window_bounds = array<i64: 24, 128>}, {pipeline_mode = #tpu.pipeline_mode<synchronous>, transform_indices = @transform_2, window_bounds = array<i64: 12, 24>}, {transform_indices = @transform_3, window_bounds = array<i64: 3, 128>}]} {
    %c0 = arith.constant 0 : index
    %c0_0 = arith.constant 0 : index
    %0 = vector.load %arg1[%c0, %c0_0] : memref<6x128xf32, #tpu.memory_space<vmem>>, vector<6x128xf32>
    %1 = vector.extract_strided_slice %0 {offsets = [0, 0], sizes = [3, 128], strides = [1, 1]} : vector<6x128xf32> to vector<3x128xf32>
    %2 = vector.extract_strided_slice %0 {offsets = [3, 0], sizes = [3, 128], strides = [1, 1]} : vector<6x128xf32> to vector<3x128xf32>
    %3 = math.tanh %2 : vector<3x128xf32>
    %cst = arith.constant 1.000000e-01 : f32
    %4 = vector.broadcast %cst : f32 to vector<3x128xf32>
    %5 = arith.mulf %4, %3 : vector<3x128xf32>
    %6 = arith.addf %1, %5 : vector<3x128xf32>
    %c0_1 = arith.constant 0 : index
    %c0_2 = arith.constant 0 : index
    %7 = vector.load %arg3[%c0_1, %c0_2] : memref<12x24xf32, #tpu.memory_space<vmem>>, vector<12x24xf32>
    %c0_3 = arith.constant 0 : index
    %c0_4 = arith.constant 0 : index
    %8 = vector.load %arg2[%c0_3, %c0_4] : memref<24x128xf32, #tpu.memory_space<vmem>>, vector<24x128xf32>
    %cst_5 = arith.constant dense<0.000000e+00> : vector<12x128xf32>
    %9 = tpu.matmul %7, %8, %cst_5 {dimension_numbers = #tpu.dot_dimension_numbers<[1], [0], [0], [1], [0, 0, 1, 1], [], []>} : vector<12x24xf32>, vector<24x128xf32>, vector<12x128xf32> -> vector<12x128xf32>
    %10 = vector.extract_strided_slice %6 {offsets = [0, 0], sizes = [1, 128], strides = [1, 1]} : vector<3x128xf32> to vector<1x128xf32>
    %11 = vector.extract_strided_slice %6 {offsets = [1, 0], sizes = [1, 128], strides = [1, 1]} : vector<3x128xf32> to vector<1x128xf32>
    %12 = vector.extract_strided_slice %6 {offsets = [2, 0], sizes = [1, 128], strides = [1, 1]} : vector<3x128xf32> to vector<1x128xf32>
    %13 = vector.extract_strided_slice %9 {offsets = [0, 0], sizes = [1, 128], strides = [1, 1]} : vector<12x128xf32> to vector<1x128xf32>
    %14 = arith.mulf %13, %10 : vector<1x128xf32>
    %15 = vector.extract_strided_slice %9 {offsets = [1, 0], sizes = [1, 128], strides = [1, 1]} : vector<12x128xf32> to vector<1x128xf32>
    %16 = arith.mulf %15, %11 : vector<1x128xf32>
    %17 = arith.addf %14, %16 : vector<1x128xf32>
    %18 = vector.extract_strided_slice %9 {offsets = [2, 0], sizes = [1, 128], strides = [1, 1]} : vector<12x128xf32> to vector<1x128xf32>
    %19 = arith.mulf %18, %12 : vector<1x128xf32>
    %20 = arith.addf %17, %19 : vector<1x128xf32>
    %21 = vector.extract_strided_slice %9 {offsets = [3, 0], sizes = [1, 128], strides = [1, 1]} : vector<12x128xf32> to vector<1x128xf32>
    %22 = arith.addf %20, %21 : vector<1x128xf32>
    %c0_6 = arith.constant 0 : index
    %c0_7 = arith.constant 0 : index
    %23 = vector.load %arg4[%c0_6, %c0_7] : memref<3x128xf32, #tpu.memory_space<vmem>>, vector<1x128xf32>
    tpu.vector_store %arg4[%c0_6, %c0_7], %22 {strides = array<i32>} : memref<3x128xf32, #tpu.memory_space<vmem>>, vector<1x128xf32>,
    %24 = vector.extract_strided_slice %9 {offsets = [4, 0], sizes = [1, 128], strides = [1, 1]} : vector<12x128xf32> to vector<1x128xf32>
    %25 = arith.mulf %24, %10 : vector<1x128xf32>
    %26 = vector.extract_strided_slice %9 {offsets = [5, 0], sizes = [1, 128], strides = [1, 1]} : vector<12x128xf32> to vector<1x128xf32>
    %27 = arith.mulf %26, %11 : vector<1x128xf32>
    %28 = arith.addf %25, %27 : vector<1x128xf32>
    %29 = vector.extract_strided_slice %9 {offsets = [6, 0], sizes = [1, 128], strides = [1, 1]} : vector<12x128xf32> to vector<1x128xf32>
    %30 = arith.mulf %29, %12 : vector<1x128xf32>
    %31 = arith.addf %28, %30 : vector<1x128xf32>
    %32 = vector.extract_strided_slice %9 {offsets = [7, 0], sizes = [1, 128], strides = [1, 1]} : vector<12x128xf32> to vector<1x128xf32>
    %33 = arith.addf %31, %32 : vector<1x128xf32>
    %c1 = arith.constant 1 : index
    %c0_8 = arith.constant 0 : index
    %34 = vector.load %arg4[%c1, %c0_8] : memref<3x128xf32, #tpu.memory_space<vmem>>, vector<1x128xf32>
    tpu.vector_store %arg4[%c1, %c0_8], %33 {strides = array<i32>} : memref<3x128xf32, #tpu.memory_space<vmem>>, vector<1x128xf32>,
    %35 = vector.extract_strided_slice %9 {offsets = [8, 0], sizes = [1, 128], strides = [1, 1]} : vector<12x128xf32> to vector<1x128xf32>
    %36 = arith.mulf %35, %10 : vector<1x128xf32>
    %37 = vector.extract_strided_slice %9 {offsets = [9, 0], sizes = [1, 128], strides = [1, 1]} : vector<12x128xf32> to vector<1x128xf32>
    %38 = arith.mulf %37, %11 : vector<1x128xf32>
    %39 = arith.addf %36, %38 : vector<1x128xf32>
    %40 = vector.extract_strided_slice %9 {offsets = [10, 0], sizes = [1, 128], strides = [1, 1]} : vector<12x128xf32> to vector<1x128xf32>
    %41 = arith.mulf %40, %12 : vector<1x128xf32>
    %42 = arith.addf %39, %41 : vector<1x128xf32>
    %43 = vector.extract_strided_slice %9 {offsets = [11, 0], sizes = [1, 128], strides = [1, 1]} : vector<12x128xf32> to vector<1x128xf32>
    %44 = arith.addf %42, %43 : vector<1x128xf32>
    %c2 = arith.constant 2 : index
    %c0_9 = arith.constant 0 : index
    %45 = vector.load %arg4[%c2, %c0_9] : memref<3x128xf32, #tpu.memory_space<vmem>>, vector<1x128xf32>
    tpu.vector_store %arg4[%c2, %c0_9], %44 {strides = array<i32>} : memref<3x128xf32, #tpu.memory_space<vmem>>, vector<1x128xf32>,
    return
  }
  func.func @transform_0(%arg0: i32) -> (i32, i32) {
    %c0_i32 = arith.constant 0 : i32
    %c0_i32_0 = arith.constant 0 : i32
    return %c0_i32, %arg0 : i32, i32
  }
  func.func @transform_1(%arg0: i32) -> (i32, i32) {
    %c0_i32 = arith.constant 0 : i32
    %c0_i32_0 = arith.constant 0 : i32
    return %c0_i32, %arg0 : i32, i32
  }
  func.func @transform_2(%arg0: i32) -> (i32, i32) {
    %c0_i32 = arith.constant 0 : i32
    %c0_i32_0 = arith.constant 0 : i32
    %c0_i32_1 = arith.constant 0 : i32
    return %c0_i32, %c0_i32_0 : i32, i32
  }
  func.func @transform_3(%arg0: i32) -> (i32, i32) {
    %c0_i32 = arith.constant 0 : i32
    %c0_i32_0 = arith.constant 0 : i32
    return %c0_i32, %arg0 : i32, i32
  }
}

</mosaic_0001>

<llo_original>
// kernel: model_forward.1
$region0: #{model_forward.1}
  #allocation0 [shape = 'u32[]', space=smem, size = 0x4, offset = 0x4, fixed_abs, tag = 'smem constant byte address 0x4 - core index']
  #allocation1 [shape = 'u32[72,128]{1,0:T(1,128)}', space=vmem, size = 0x9000, scoped, tag = 'internal scratch']
  %s0 = inlined_call_operand.vmem [shape: f32[6,200], index: 0, kind: input, shape index: {}]
  %s1 = inlined_call_operand.vmem [shape: f32[24,200], index: 1, kind: input, shape index: {}]
  %s2 = inlined_call_operand.vmem [shape: f32[12,24], index: 2, kind: input, shape index: {}]
  %s3 = inlined_call_operand.vmem [shape: f32[3,200], index: 3, kind: output, shape index: {}]
  %s4 = sld [smem:[#allocation0]]
  $region83: #{model_forward.1} parent=0
    _
  %s6 = ssub.s32 1, %s4
  %s7 = scalar_select 0, %s6, %s4
  $region1: #{model_forward.1} parent=0
    #allocation2 [shape = 'u8[24576]{0}', space=vmem, size = 0x6000, scoped, tag = 'input window, operand 1']
    loop: start=0, step=1, limit=4
    $region2: #{model_forward.1} parent=1 // loop_pre_header
      _
    $region3: #{model_forward.1} parent=1 // loop_header
      %s9 = sphi 0, %s13
      %p10 = scmp.ge.s32.totalorder %s9, 4
      %s19 = sphi 0, %s21
      %s22 = sphi 0, %s19
      %s23 = sphi 0, %s22
      %s39 = sphi 0, %s23
      %s45 = sphi 0, %s47
      %s48 = sphi 0, %s45
      %s49 = sphi 0, %s48
      %s65 = sphi 0, %s49
      %s69 = sphi 0, %s69
      %s71 = sphi 0, %s69
      %s72 = sphi 0, %s71
      %s86 = sphi 0, %s72
      %s92 = sphi 0, %s94
      %s95 = sphi 0, %s92
      %s96 = sphi 0, %s95
      %s112 = sphi 0, %s96
    $region4: #{model_forward.1} parent=1 // loop_header_branch
      %12 = sbr.rel (%p10) target = $region8
    $region5: #{model_forward.1} parent=1 // loop_body
      %s14 = ssub.s32 %s9, 1
      %s15 = ssub.s32 %s9, 2
      %s16 = sadd.s32 %s9, 1
      %s17 = ssub.s32 %s9, %s16
      %p18 = scmp.eq.s32.totalorder %s17, 0
      %s20 = sadd.s32 %s19, 1
      %s21 = scalar_select %p18, %s19, %s20
      %p24 = pneg %p18
      %p25 = scmp.eq.s32.totalorder %s9, 1
      %p26 = por %p24, %p25
      %p27 = scmp.ne.s32.totalorder %s19, %s22
      %p28 = scmp.eq.s32.totalorder %s9, 0
      %p29 = por %p27, %p28
      %p30 = scmp.ne.s32.totalorder %s19, %s22
      %p31 = scmp.eq.s32.totalorder %s14, 1
      %p32 = por %p30, %p31
      %p33 = scmp.ne.s32.totalorder %s22, %s23
      %p34 = scmp.eq.s32.totalorder %s14, 0
      %p35 = por %p33, %p34
      %p36 = scmp.ne.s32.totalorder %s22, %s23
      %p37 = scmp.eq.s32.totalorder %s15, 1
      %p38 = por %p36, %p37
      %p40 = scmp.ne.s32.totalorder %s23, %s39
      %p41 = scmp.eq.s32.totalorder %s15, 0
      %p42 = por %p40, %p41
      %s43 = ssub.s32 %s9, %s16
      %p44 = scmp.eq.s32.totalorder %s43, 0
      %s46 = sadd.s32 %s45, 1
      %s47 = scalar_select %p44, %s45, %s46
      %p50 = pneg %p44
      %p51 = scmp.eq.s32.totalorder %s9, 1
      %p52 = por %p50, %p51
      %p53 = scmp.ne.s32.totalorder %s45, %s48
      %p54 = scmp.eq.s32.totalorder %s9, 0
      %p55 = por %p53, %p54
      %p56 = scmp.ne.s32.totalorder %s45, %s48
      %p57 = scmp.eq.s32.totalorder %s14, 1
      %p58 = por %p56, %p57
      %p59 = scmp.ne.s32.totalorder %s48, %s49
      %p60 = scmp.eq.s32.totalorder %s14, 0
      %p61 = por %p59, %p60
      %p62 = scmp.ne.s32.totalorder %s48, %s49
      %p63 = scmp.eq.s32.totalorder %s15, 1
      %p64 = por %p62, %p63
      %p66 = scmp.ne.s32.totalorder %s49, %s65
      %p67 = scmp.eq.s32.totalorder %s15, 0
      %p68 = por %p66, %p67
      %s70 = sadd.s32 %s69, 1
      %p73 = scmp.eq.s32.totalorder %s9, 1
      %p74 = scmp.ne.s32.totalorder %s69, %s71
      %p75 = scmp.eq.s32.totalorder %s9, 0
      %p76 = por %p74, %p75
      %p77 = scmp.ne.s32.totalorder %s69, %s71
      %p78 = scmp.eq.s32.totalorder %s14, 1
      %p79 = por %p77, %p78
      %p80 = scmp.ne.s32.totalorder %s71, %s72
      %p81 = scmp.eq.s32.totalorder %s14, 0
      %p82 = por %p80, %p81
      %p83 = scmp.ne.s32.totalorder %s71, %s72
      %p84 = scmp.eq.s32.totalorder %s15, 1
      %p85 = por %p83, %p84
      %p87 = scmp.ne.s32.totalorder %s72, %s86
      %p88 = scmp.eq.s32.totalorder %s15, 0
      %p89 = por %p87, %p88
      %s90 = ssub.s32 %s9, %s16
      %p91 = scmp.eq.s32.totalorder %s90, 0
      %s93 = sadd.s32 %s92, 1
      %s94 = scalar_select %p91, %s92, %s93
      %p97 = pneg %p91
      %p98 = scmp.eq.s32.totalorder %s9, 1
      %p99 = por %p97, %p98
      %p100 = scmp.ne.s32.totalorder %s92, %s95
      %p101 = scmp.eq.s32.totalorder %s9, 0
      %p102 = por %p100, %p101
      %p103 = scmp.ne.s32.totalorder %s92, %s95
      %p104 = scmp.eq.s32.totalorder %s14, 1
      %p105 = por %p103, %p104
      %p106 = scmp.ne.s32.totalorder %s95, %s96
      %p107 = scmp.eq.s32.totalorder %s14, 0
      %p108 = por %p106, %p107
      %p109 = scmp.ne.s32.totalorder %s95, %s96
      %p110 = scmp.eq.s32.totalorder %s15, 1
      %p111 = por %p109, %p110
      %p113 = scmp.ne.s32.totalorder %s96, %s112
      %p114 = scmp.eq.s32.totalorder %s15, 0
      %p115 = por %p113, %p114
      %p116 = scmp.le.s32.totalorder 1, %s9
      %p117 = scmp.lt.s32.totalorder %s9, 3
      %p118 = pnand %p116, %p117
      %p119 = pneg %p118
      // Predicated region
      $region9: #{model_forward.1} parent=5 // pred_check
        _
      $region10: #{model_forward.1} parent=5 // pred_check_branch
        %121 = sbr.rel (%p118) target = $region12
      $region11: #{model_forward.1} parent=5 // pred_region
        %s122 = ssub.s32 %s9, 1
        // Predicated region
        $region13: #{model_forward.1} parent=11 // pred_check
          %p123 = pneg %p82
        $region14: #{model_forward.1} parent=11 // pred_check_branch
          %125 = sbr.rel (%p123) target = $region16
        $region15: #{model_forward.1} parent=11 // pred_region
          _
        $region16: #{model_forward.1} parent=11 // pred_fallthru
          _
      $region12: #{model_forward.1} parent=5 // pred_fallthru
        _
      %p126 = scmp.lt.s32.totalorder %s9, 2
      // Predicated region
      $region17: #{model_forward.1} parent=5 // pred_check
        %p127 = pneg %p126
      $region18: #{model_forward.1} parent=5 // pred_check_branch
        %129 = sbr.rel (%p127) target = $region20
      $region19: #{model_forward.1} parent=5 // pred_region
        // Predicated region
        $region21: #{model_forward.1} parent=19 // pred_check
          %p130 = pneg %p29
        $region22: #{model_forward.1} parent=19 // pred_check_branch
          %132 = sbr.rel (%p130) target = $region24
        $region23: #{model_forward.1} parent=19 // pred_region
          %p133 = scmp.lt.s32.totalorder %s9, 1
          %s134 = scalar_select %p133, %s9, 1
          %s135 = smul.addr %s134, 8
          %s136 = scalar_lea.vmem %s0, %s135
        $region24: #{model_forward.1} parent=19 // pred_fallthru
          _
        // Predicated region
        $region25: #{model_forward.1} parent=19 // pred_check
          %p137 = pneg %p55
        $region26: #{model_forward.1} parent=19 // pred_check_branch
          %139 = sbr.rel (%p137) target = $region28
        $region27: #{model_forward.1} parent=19 // pred_region
          %s140 = sand.u32 %s45, 1
          %s141 = sand.u32 %s45, 1
          %s142 = smul.addr %s141, 24
          %s143 = scalar_lea.vmem [#allocation2], %s142
          %s144 = smul.addr %s9, 8
          %s145 = scalar_lea.vmem %s1, %s144
          // Predicated region
          $region29: #{model_forward.1} parent=27 // pred_check
            _
          $region30: #{model_forward.1} parent=27 // pred_check_branch
            %147 = sbr.rel (0) target = $region32
          $region31: #{model_forward.1} parent=27 // pred_region
            // Predicated region
            $region33: #{model_forward.1} parent=31 // pred_check
              _
            $region34: #{model_forward.1} parent=31 // pred_check_branch
              %149 = sbr.rel (0) target = $region36
            $region35: #{model_forward.1} parent=31 // pred_region
              // Predicated region
              $region48: #{model_forward.1} parent=35 // pred_check
                _
              $region49: #{model_forward.1} parent=35 // pred_check_branch
                %169 = sbr.rel (0) target = $region51
              $region50: #{model_forward.1} parent=35 // pred_region
                loop: start=0, step=1, limit=1
                $region52: #{model_forward.1} parent=50 // loop_pre_header
                  _
                $region53: #{model_forward.1} parent=50 // loop_header
                  %s171 = sphi 0, %s175
                  %p172 = scmp.ge.s32.totalorder %s171, 1
                  %s176 = sphi %s145, %s145
                  %s177 = sphi %s143, %s143
                $region54: #{model_forward.1} parent=50 // loop_header_branch
                  %174 = sbr.rel (%p172) target = $region58
                $region55: #{model_forward.1} parent=50 // loop_body
                  %v178 = vld [vmem:[%s176] sm:$0xff]
                  %179 = vst [vmem:[%s177] sm:$0xff] %v178
                  %v180 = vld [vmem:[%s176 + $0x10] sm:$0xff]
                  %181 = vst [vmem:[%s177 + $0x8] sm:$0xff] %v180
                  %v182 = vld [vmem:[%s176 + $0x20] sm:$0xff]
                  %183 = vst [vmem:[%s177 + $0x10] sm:$0xff] %v182
                $region56: #{model_forward.1} parent=50 // loop_footer
                  %s175 = sadd.s32 1, %s171
                $region57: #{model_forward.1} parent=50 // loop_footer_branch
                  %170 = sbr.rel target = $region53
                $region58: #{model_forward.1} parent=50 // loop_exit
                  _
              $region51: #{model_forward.1} parent=35 // pred_fallthru
                _
              // Predicated region
              $region59: #{model_forward.1} parent=35 // pred_check
                _
              $region60: #{model_forward.1} parent=35 // pred_check_branch
                %185 = sbr.rel target = $region62
              $region61: #{model_forward.1} parent=35 // pred_region
                _
              $region62: #{model_forward.1} parent=35 // pred_fallthru
                _
            $region36: #{model_forward.1} parent=31 // pred_fallthru
              _
            // Predicated region
            $region37: #{model_forward.1} parent=31 // pred_check
              _
            $region38: #{model_forward.1} parent=31 // pred_check_branch
              %151 = sbr.rel target = $region40
            $region39: #{model_forward.1} parent=31 // pred_region
              %s153 = ssub.s32 256, 1
              loop: start=0, step=1, limit=1
              $region41: #{model_forward.1} parent=39 // loop_pre_header
                _
              $region42: #{model_forward.1} parent=39 // loop_header
                %s155 = sphi 0, %s159
                %p156 = scmp.ge.s32.totalorder %s155, 1
                %s160 = sphi %s145, %s145
                %s161 = sphi %s143, %s143
              $region43: #{model_forward.1} parent=39 // loop_header_branch
                %158 = sbr.rel (%p156) target = $region47
              $region44: #{model_forward.1} parent=39 // loop_body
                %v162 = vld [vmem:[%s160] sm:%s153]
                %163 = vst [vmem:[%s161] sm:%s153] %v162
                %v164 = vld [vmem:[%s160 + $0x10] sm:%s153]
                %165 = vst [vmem:[%s161 + $0x8] sm:%s153] %v164
                %v166 = vld [vmem:[%s160 + $0x20] sm:%s153]
                %167 = vst [vmem:[%s161 + $0x10] sm:%s153] %v166
              $region45: #{model_forward.1} parent=39 // loop_footer
                %s159 = sadd.s32 1, %s155
              $region46: #{model_forward.1} parent=39 // loop_footer_branch
                %154 = sbr.rel target = $region42
              $region47: #{model_forward.1} parent=39 // loop_exit
                _
            $region40: #{model_forward.1} parent=31 // pred_fallthru
              _
          $region32: #{model_forward.1} parent=27 // pred_fallthru
            _
          %186 = vnop
        $region28: #{model_forward.1} parent=19 // pred_fallthru
          _
      $region20: #{model_forward.1} parent=5 // pred_fallthru
        _
      %p187 = scmp.le.s32.totalorder 1, %s9
      %p188 = scmp.lt.s32.totalorder %s9, 3
      %p189 = pnand %p187, %p188
      %p190 = pneg %p189
      // Predicated region
      $region63: #{model_forward.1} parent=5 // pred_check
        _
      $region64: #{model_forward.1} parent=5 // pred_check_branch
        %192 = sbr.rel (%p189) target = $region66
      $region65: #{model_forward.1} parent=5 // pred_region
        %s193 = ssub.s32 %s9, 1
        %s194 = sand.u32 %s48, 1
        %s195 = sand.u32 %s48, 1
        %s196 = smul.addr %s195, 24
        %s197 = scalar_lea.vmem [#allocation2], %s196
        // Predicated region
        $region67: #{model_forward.1} parent=65 // pred_check
          %p198 = pneg %p61
        $region68: #{model_forward.1} parent=65 // pred_check_branch
          %200 = sbr.rel (%p198) target = $region70
        $region69: #{model_forward.1} parent=65 // pred_region
          _
        $region70: #{model_forward.1} parent=65 // pred_fallthru
          _
        %p201 = scmp.lt.s32.totalorder %s14, 1
        %s202 = scalar_select %p201, %s14, 1
        %s203 = smul.addr %s202, 8
        %s204 = scalar_lea.vmem %s0, %s203
        %p205 = pneg %p35
        %p206 = pneg %p32
        %s207 = sand.u32 %s48, 1
        %s208 = sand.u32 %s48, 1
        %s209 = smul.addr %s208, 24
        %s210 = scalar_lea.vmem [#allocation2], %s209
        %p211 = pneg %p61
        %p212 = pneg %p58
        %p213 = pneg %p82
        %p214 = pneg %p79
        %p215 = pneg %p108
        %p216 = pneg %p105
        %p217 = scmp.lt.s32.totalorder %s14, 1
        %s218 = scalar_select %p217, %s14, 1
        %s219 = smul.addr %s218, 4
        %s220 = scalar_lea.vmem %s3, %s219
        %p221 = scmp.lt.s32.totalorder %s14, 1
        %s222 = scalar_select %p221, %s14, 1
        %s223 = smul.addr %s222, 8
        %s224 = scalar_lea.vmem %s0, %s223
        %p225 = scmp.lt.s32.totalorder %s14, 1
        %s226 = scalar_select %p225, %s14, 1
        %s227 = smul.addr %s226, 4
        %s228 = scalar_lea.vmem %s3, %s227
        %v229 = vld [vmem:[%s224] sm:$0x3f]
        %v230 = vtanh.pop %v229
        %v231 = vmul.f32 %v230, 0.1
        %v233 = vrot.slane %v231, 3
        %v235 = vadd.f32 %v229, %v233
        %v236 = vld [vmem:[%s2] sm:$0xff]
        %v237 = vld [vmem:[%s2 + $0x8] sm:$0xf]
        %v238 = vld [vmem:[%s197] sm:$0xff]
        %v239 = vld [vmem:[%s197 + $0x8] sm:$0xff]
        %v240 = vld [vmem:[%s197 + $0x10] sm:$0xff]
        %vm241 = vcmask 195584
        %v243 = vsel %vm241, %v236, 0
        %v246 = vsel %vm241, %v237, 0
        %248 = vmatpush.msra.mxu0 0.0
        %249 = vmatpush.msra.mxu0 0.0
        %250 = vmatpush.msra.mxu0 0.0
        %251 = vmatpush.msra.mxu0 0.0
        %252 = vmatpush.msra.mxu0 0.0
        %253 = vmatpush.msra.mxu0 0.0
        %254 = vmatpush.msra.mxu0 0.0
        %255 = vmatpush.msra.mxu0 0.0
        %256 = vmatpush.msra.mxu0 0.0
        %257 = vmatpush.msra.mxu0 0.0
        %258 = vmatpush.msra.mxu0 0.0
        %259 = vmatpush.msra.mxu0 0.0
        %260 = vmatpush.msra.mxu0 0.0
        %261 = vmatpush.msra.mxu0 %v240
        %262 = vmatpush.msra.mxu0 %v239
        %263 = vmatpush.msra.mxu0 %v238
        %264 = vmatmul.f32.gmra.mxu0 %v243
        %v265 = vpop.f32.mrf.mxu0
        %v266 = vadd.f32 0.0, %v265
        %267 = vmatmul.f32.gmra.mxu0 %v246
        %v268 = vpop.f32.mrf.mxu0
        %v269 = vadd.f32 0.0, %v268
        %270 = vdwg.mxu0
        %v271 = vmul.f32 %v266, %v235
        %v273 = vrot.slane %v271, 1
        %v275 = vadd.f32 %v271, %v273
        %v276 = vrot.slane %v271, 2
        %v278 = vadd.f32 %v275, %v276
        %v280 = vrot.slane %v266, 3
        %v282 = vadd.f32 %v278, %v280
        %283 = vst [vmem:[%s228] sm:$0x1] %v282
        %v285 = vrot.slane %v235, 4
        %v287 = vmul.f32 %v266, %v285
        %v289 = vrot.slane %v287, 1
        %v291 = vadd.f32 %v287, %v289
        %v292 = vrot.slane %v287, 2
        %v294 = vadd.f32 %v291, %v292
        %v295 = vadd.f32 %v294, %v280
        %296 = vst [vmem:[%s228 - $0x3] sm:$0x10] %v295
        %v297 = vmul.f32 %v269, %v235
        %v299 = vrot.slane %v297, 1
        %v301 = vadd.f32 %v297, %v299
        %v302 = vrot.slane %v297, 2
        %v304 = vadd.f32 %v301, %v302
        %v306 = vrot.slane %v269, 3
        %v308 = vadd.f32 %v304, %v306
        %309 = vst [vmem:[%s228 + $0x2] sm:$0x1] %v308
        %p310 = scmp.lt.s32.totalorder %s14, 1
        %s311 = scalar_select %p310, %s14, 1
        %s312 = smul.addr %s311, 4
        %s313 = scalar_lea.vmem %s3, %s312
        // Predicated region
        $region71: #{model_forward.1} parent=65 // pred_check
          %p314 = pneg %p105
        $region72: #{model_forward.1} parent=65 // pred_check_branch
          %316 = sbr.rel (%p314) target = $region74
        $region73: #{model_forward.1} parent=65 // pred_region
          _
        $region74: #{model_forward.1} parent=65 // pred_fallthru
          _
      $region66: #{model_forward.1} parent=5 // pred_fallthru
        _
      %p317 = scmp.le.s32.totalorder 2, %s9
      // Predicated region
      $region75: #{model_forward.1} parent=5 // pred_check
        %p318 = pneg %p317
      $region76: #{model_forward.1} parent=5 // pred_check_branch
        %320 = sbr.rel (%p318) target = $region78
      $region77: #{model_forward.1} parent=5 // pred_region
        %s321 = ssub.s32 %s9, 2
        // Predicated region
        $region79: #{model_forward.1} parent=77 // pred_check
          %p322 = pneg %p111
        $region80: #{model_forward.1} parent=77 // pred_check_branch
          %324 = sbr.rel (%p322) target = $region82
        $region81: #{model_forward.1} parent=77 // pred_region
          %p325 = scmp.lt.s32.totalorder %s15, 1
          %s326 = scalar_select %p325, %s15, 1
          %s327 = smul.addr %s326, 4
          %s328 = scalar_lea.vmem %s3, %s327
        $region82: #{model_forward.1} parent=77 // pred_fallthru
          _
      $region78: #{model_forward.1} parent=5 // pred_fallthru
        _
    $region6: #{model_forward.1} parent=1 // loop_footer
      %s13 = sadd.s32 1, %s9
    $region7: #{model_forward.1} parent=1 // loop_footer_branch
      %8 = sbr.rel target = $region3
    $region8: #{model_forward.1} parent=1 // loop_exit
      _

</llo_original>
